<compile_context>
chip_gen: v6e
topology: v6e:2x2x1
jax: 0.10.0
libtpu: 0.0.40
codegen_flags: <defaults>
</compile_context>

<pallas_src>
import jax
import jax.numpy as jnp
from jax.experimental import pallas as pl
from jax.experimental.pallas import tpu as pltpu

SMOOTH = 1.0
ALPHA = 0.0
WITH_LOGITS = True
REDUCTION = "mean"


def _round_up(x, m):
    return (x + m - 1) // m * m


def dice_loss(inputs, target, mask=None, *, tile_n=1024, num_parallel=2):
    """inputs: (B, S, C) float logits; target: (B, S) int; mask: (B, S) bool or None."""
    B, S, C = inputs.shape
    N = B * S
    assert C > 2, "only the multi-class path is implemented"

    x = inputs.reshape(N, C)                          # keep native dtype
    t = target.reshape(N, 1).astype(jnp.int32)
    if mask is None:
        m = jnp.ones((N, 1), jnp.float32)
    else:
        m = mask.reshape(N, 1).astype(jnp.float32)

    P = num_parallel
    # Row-tile size: as big as possible while (a) one block stays ~<= 8 MiB (it is
    # double-buffered) and (b) it does not exceed one P-th of the rows (rounded to 8).
    bytes_per_row = C * x.dtype.itemsize
    vmem_cap_rows = max(8, ((8 * 1024 * 1024) // max(1, bytes_per_row)) // 8 * 8)
    tn = max(8, min(tile_n, vmem_cap_rows, _round_up(pl.cdiv(N, P), 8)))
    nt_total = pl.cdiv(N, tn)          # real row tiles
    nt_inner = pl.cdiv(nt_total, P)    # tiles per parallel slice

    def row_block(p, i):
        # Contiguous tiles per slice; clamp so a dummy (past-the-end) tile never asks
        # for a fully out-of-bounds block — its rows are masked out inside the kernel.
        return (jnp.minimum(p * nt_inner + i, nt_total - 1), 0)

    def kernel(x_ref, t_ref, m_ref, sum_p_ref, sum_t_ref, inter_ref):
        p_id = pl.program_id(0)
        i_id = pl.program_id(1)

        @pl.when(i_id == 0)
        def _():
            sum_p_ref[...] = jnp.zeros_like(sum_p_ref)
            sum_t_ref[...] = jnp.zeros_like(sum_t_ref)
            inter_ref[...] = jnp.zeros_like(inter_ref)

        # Row validity: handles the ragged last tile and clamped dummy tiles.
        row0 = (p_id * nt_inner + i_id) * tn
        rows = row0 + jax.lax.broadcasted_iota(jnp.int32, (tn, 1), 0)
        valid = rows < N                                              # (tn, 1)

        xv = jnp.where(valid, x_ref[...].astype(jnp.float32), 0.0)    # (tn, C)
        if WITH_LOGITS:
            e = jnp.exp(xv - jnp.max(xv, axis=-1, keepdims=True))
            # reciprocal-multiply (EUP) instead of a (tn, C) VPU divide.
            probs = e * pl.reciprocal(jnp.sum(e, axis=-1, keepdims=True))
        else:
            probs = xv

        msk = jnp.where(valid, m_ref[...].astype(jnp.float32), 0.0)   # (tn, 1)
        tgt = t_ref[...]                                              # (tn, 1) int32
        cls = jax.lax.broadcasted_iota(jnp.int32, (tn, C), 1)
        onehot = (cls == tgt).astype(jnp.float32) * msk               # (tn, C)
        probs = probs * msk
        if ALPHA != 0.0:
            probs = (1.0 - probs) ** ALPHA * probs

        sum_p_ref[...] += jnp.sum(probs, axis=0, keepdims=True)[None]
        sum_t_ref[...] += jnp.sum(onehot, axis=0, keepdims=True)[None]
        inter_ref[...] += jnp.sum(probs * onehot, axis=0, keepdims=True)[None]

    acc_shape = jax.ShapeDtypeStruct((P, 1, C), jnp.float32)
    acc_spec = pl.BlockSpec((1, 1, C), lambda p, i: (p, 0, 0))

    sum_p, sum_t, inter = pl.pallas_call(
        kernel,
        out_shape=(acc_shape, acc_shape, acc_shape),
        grid_spec=pltpu.PrefetchScalarGridSpec(
            num_scalar_prefetch=0,
            grid=(P, nt_inner),
            in_specs=[
                pl.BlockSpec((tn, C), row_block),
                pl.BlockSpec((tn, 1), row_block),
                pl.BlockSpec((tn, 1), row_block),
            ],
            out_specs=(acc_spec, acc_spec, acc_spec),
        ),
        compiler_params=pltpu.CompilerParams(
            dimension_semantics=("parallel", "arbitrary"),
            vmem_limit_bytes=64 * 1024 * 1024,
        ),
    )(x, t, m)

    # Tiny epilogue over (C,) vectors (negligible vs the HBM sweep above).
    sum_p = jnp.sum(sum_p, axis=(0, 1))
    sum_t = jnp.sum(sum_t, axis=(0, 1))
    inter = jnp.sum(inter, axis=(0, 1))
    denom = sum_p + sum_t + SMOOTH
    loss_sum = N * C - jnp.sum((2.0 * inter + N * SMOOTH) / denom)
    if REDUCTION == "mean":
        return loss_sum / N
    if REDUCTION == "sum":
        return loss_sum
    # TODO(synk): reduction=None would need a second per-token pass; not implemented.
    raise NotImplementedError("reduction=None is not implemented in the fused kernel")


def dice_loss_ref(inputs, target, mask=None):
    """Pure-JAX reference mirroring the PyTorch module's default multi-class path."""
    B, S, C = inputs.shape
    N = B * S
    p = jax.nn.softmax(inputs.astype(jnp.float32), axis=-1) if WITH_LOGITS else inputs.astype(jnp.float32)
    p = p.reshape(N, C)
    t = jax.nn.one_hot(target.reshape(N), C, dtype=jnp.float32)
    m = jnp.ones((N, 1), jnp.float32) if mask is None else mask.reshape(N, 1).astype(jnp.float32)
    p = p * m
    t = t * m
    if ALPHA != 0.0:
        p = (1.0 - p) ** ALPHA * p
    denom = p.sum(0) + t.sum(0) + SMOOTH                              # (C,) per-class scalar denom
    loss = jnp.sum(1.0 - (2.0 * p * t + SMOOTH) / denom, axis=-1)     # (N,)
    if REDUCTION == "mean":
        return jnp.mean(loss)
    if REDUCTION == "sum":
        return jnp.sum(loss)
    return loss


if __name__ == "__main__":
    key = jax.random.PRNGKey(0)
    k1, k2, k3, k4, k5 = jax.random.split(key, 5)

    # Test 1: module-style shapes [B, S, C] with a boolean mask.
    B, S, C = 2, 16, 5
    inputs = jax.random.normal(k1, (B, S, C), dtype=jnp.float32)      # logits
    target = jax.random.randint(k2, (B, S), 0, C, dtype=jnp.int32)
    mask = jax.random.bernoulli(k3, 0.8, (B, S))

    out = jax.block_until_ready(dice_loss(inputs, target, mask))
    ref = dice_loss_ref(inputs, target, mask)
    assert jnp.allclose(out, ref, rtol=1e-5, atol=1e-5), (out, ref)

    # Test 2: no mask, ragged row count (N=21 exercises the masked remainder tile).
    B2, S2, C2 = 3, 7, 6
    inputs2 = jax.random.normal(k4, (B2, S2, C2), dtype=jnp.float32)
    target2 = jax.random.randint(k5, (B2, S2), 0, C2, dtype=jnp.int32)

    out2 = jax.block_until_ready(dice_loss(inputs2, target2))
    ref2 = dice_loss_ref(inputs2, target2)
    assert jnp.allclose(out2, ref2, rtol=1e-5, atol=1e-5), (out2, ref2)

    print("KERNEL_OK")
</pallas_src>

<mosaic_0001>
module attributes {stable_mosaic.version = 11 : i64} {
  func.func @kernel(%arg0: i32, %arg1: i32, %arg2: memref<16x5xf32, #tpu.memory_space<vmem>>, %arg3: memref<16x1xi32, #tpu.memory_space<vmem>>, %arg4: memref<16x1xf32, #tpu.memory_space<vmem>>, %arg5: memref<1x1x5xf32, #tpu.memory_space<vmem>>, %arg6: memref<1x1x5xf32, #tpu.memory_space<vmem>>, %arg7: memref<1x1x5xf32, #tpu.memory_space<vmem>>) attributes {dimension_semantics = [#tpu.dimension_semantics<parallel>, #tpu.dimension_semantics<arbitrary>], iteration_bounds = array<i64: 2, 1>, scalar_prefetch = 0 : i64, scratch_operands = 0 : i64, tpu.core_type = #tpu.core_type<tc>, window_params = [{transform_indices = @transform_0, window_bounds = array<i64: 16, 5>}, {transform_indices = @transform_1, window_bounds = array<i64: 16, 1>}, {transform_indices = @transform_2, window_bounds = array<i64: 16, 1>}, {transform_indices = @transform_3, window_bounds = array<i64: 1, 1, 5>}, {transform_indices = @transform_4, window_bounds = array<i64: 1, 1, 5>}, {transform_indices = @transform_5, window_bounds = array<i64: 1, 1, 5>}]} {
    %c0_i32 = arith.constant 0 : i32
    %0 = arith.cmpi eq, %arg1, %c0_i32 : i32
    %1 = arith.extui %0 : i1 to i32
    %c0_i32_0 = arith.constant 0 : i32
    %2 = arith.cmpi ne, %1, %c0_i32_0 : i32
    scf.if %2 {
      %cst_30 = arith.constant 0.000000e+00 : f32
      %58 = vector.broadcast %cst_30 : f32 to vector<1x1x5xf32>
      %c0_31 = arith.constant 0 : index
      %c0_32 = arith.constant 0 : index
      %c0_33 = arith.constant 0 : index
      %59 = vector.load %arg5[%c0_31, %c0_32, %c0_33] : memref<1x1x5xf32, #tpu.memory_space<vmem>>, vector<1x1x5xf32>
      tpu.vector_store %arg5[%c0_31, %c0_32, %c0_33], %58 {strides = array<i32>} : memref<1x1x5xf32, #tpu.memory_space<vmem>>, vector<1x1x5xf32>,
      %cst_34 = arith.constant 0.000000e+00 : f32
      %60 = vector.broadcast %cst_34 : f32 to vector<1x1x5xf32>
      %c0_35 = arith.constant 0 : index
      %c0_36 = arith.constant 0 : index
      %c0_37 = arith.constant 0 : index
      %61 = vector.load %arg6[%c0_35, %c0_36, %c0_37] : memref<1x1x5xf32, #tpu.memory_space<vmem>>, vector<1x1x5xf32>
      tpu.vector_store %arg6[%c0_35, %c0_36, %c0_37], %60 {strides = array<i32>} : memref<1x1x5xf32, #tpu.memory_space<vmem>>, vector<1x1x5xf32>,
      %cst_38 = arith.constant 0.000000e+00 : f32
      %62 = vector.broadcast %cst_38 : f32 to vector<1x1x5xf32>
      %c0_39 = arith.constant 0 : index
      %c0_40 = arith.constant 0 : index
      %c0_41 = arith.constant 0 : index
      %63 = vector.load %arg7[%c0_39, %c0_40, %c0_41] : memref<1x1x5xf32, #tpu.memory_space<vmem>>, vector<1x1x5xf32>
      tpu.vector_store %arg7[%c0_39, %c0_40, %c0_41], %62 {strides = array<i32>} : memref<1x1x5xf32, #tpu.memory_space<vmem>>, vector<1x1x5xf32>,
    } else {
    }
    %c1_i32 = arith.constant 1 : i32
    %3 = arith.muli %arg0, %c1_i32 : i32
    %4 = arith.addi %3, %arg1 : i32
    %c16_i32 = arith.constant 16 : i32
    %5 = arith.muli %4, %c16_i32 : i32
    %6 = tpu.iota {dimensions = array<i32: 0>} : vector<16x1xi32>
    %7 = vector.broadcast %5 : i32 to vector<16x1xi32>
    %8 = arith.addi %7, %6 : vector<16x1xi32>
    %c32_i32 = arith.constant 32 : i32
    %9 = vector.broadcast %c32_i32 : i32 to vector<16x1xi32>
    %10 = arith.cmpi slt, %8, %9 : vector<16x1xi32>
    %c0 = arith.constant 0 : index
    %c0_1 = arith.constant 0 : index
    %11 = vector.load %arg2[%c0, %c0_1] : memref<16x5xf32, #tpu.memory_space<vmem>>, vector<16x5xf32>
    %cst = arith.constant 0.000000e+00 : f32
    %12 = vector.shape_cast %10 : vector<16x1xi1> to vector<16x1xi1>
    %13 = vector.broadcast %12 : vector<16x1xi1> to vector<16x5xi1>
    %14 = vector.broadcast %cst : f32 to vector<16x5xf32>
    %15 = arith.select %13, %11, %14 : vector<16x5xi1>, vector<16x5xf32>
    %cst_2 = arith.constant dense<0xFF800000> : vector<16xf32>
    %16 = vector.multi_reduction <maximumf>, %15, %cst_2 [1] : vector<16x5xf32> to vector<16xf32>
    %17 = vector.shape_cast %16 : vector<16xf32> to vector<16x1xf32>
    %18 = vector.broadcast %17 : vector<16x1xf32> to vector<16x5xf32>
    %19 = arith.subf %15, %18 : vector<16x5xf32>
    %20 = math.exp %19 : vector<16x5xf32>
    %cst_3 = arith.constant dense<0.000000e+00> : vector<16xf32>
    %21 = vector.multi_reduction <add>, %20, %cst_3 [1] : vector<16x5xf32> to vector<16xf32>
    %22 = vector.shape_cast %21 : vector<16xf32> to vector<16x1xf32>
    %23 = tpu.reciprocal %22 : vector<16x1xf32> -> vector<16x1xf32>
    %24 = vector.broadcast %23 : vector<16x1xf32> to vector<16x5xf32>
    %25 = arith.mulf %20, %24 : vector<16x5xf32>
    %c0_4 = arith.constant 0 : index
    %c0_5 = arith.constant 0 : index
    %26 = vector.load %arg4[%c0_4, %c0_5] : memref<16x1xf32, #tpu.memory_space<vmem>>, vector<16x1xf32>
    %cst_6 = arith.constant 0.000000e+00 : f32
    %27 = vector.broadcast %cst_6 : f32 to vector<16x1xf32>
    %28 = arith.select %10, %26, %27 : vector<16x1xi1>, vector<16x1xf32>
    %c0_7 = arith.constant 0 : index
    %c0_8 = arith.constant 0 : index
    %29 = vector.load %arg3[%c0_7, %c0_8] : memref<16x1xi32, #tpu.memory_space<vmem>>, vector<16x1xi32>
    %30 = tpu.iota {dimensions = array<i32: 1>} : vector<16x5xi32>
    %31 = vector.broadcast %29 : vector<16x1xi32> to vector<16x5xi32>
    %32 = arith.cmpi eq, %30, %31 : vector<16x5xi32>
    %33 = arith.extui %32 : vector<16x5xi1> to vector<16x5xi32>
    %34 = arith.sitofp %33 : vector<16x5xi32> to vector<16x5xf32>
    %35 = vector.broadcast %28 : vector<16x1xf32> to vector<16x5xf32>
    %36 = arith.mulf %34, %35 : vector<16x5xf32>
    %37 = vector.broadcast %28 : vector<16x1xf32> to vector<16x5xf32>
    %38 = arith.mulf %25, %37 : vector<16x5xf32>
    %c0_9 = arith.constant 0 : index
    %c0_10 = arith.constant 0 : index
    %c0_11 = arith.constant 0 : index
    %39 = vector.load %arg5[%c0_9, %c0_10, %c0_11] : memref<1x1x5xf32, #tpu.memory_space<vmem>>, vector<1x1x5xf32>
    %cst_12 = arith.constant dense<0.000000e+00> : vector<5xf32>
    %40 = vector.multi_reduction <add>, %38, %cst_12 [0] : vector<16x5xf32> to vector<5xf32>
    %41 = vector.shape_cast %40 : vector<5xf32> to vector<1x5xf32>
    %42 = vector.shape_cast %41 : vector<1x5xf32> to vector<1x1x5xf32>
    %43 = arith.addf %39, %42 : vector<1x1x5xf32>
    %c0_13 = arith.constant 0 : index
    %c0_14 = arith.constant 0 : index
    %c0_15 = arith.constant 0 : index
    %44 = vector.load %arg5[%c0_13, %c0_14, %c0_15] : memref<1x1x5xf32, #tpu.memory_space<vmem>>, vector<1x1x5xf32>
    tpu.vector_store %arg5[%c0_13, %c0_14, %c0_15], %43 {strides = array<i32>} : memref<1x1x5xf32, #tpu.memory_space<vmem>>, vector<1x1x5xf32>,
    %c0_16 = arith.constant 0 : index
    %c0_17 = arith.constant 0 : index
    %c0_18 = arith.constant 0 : index
    %45 = vector.load %arg6[%c0_16, %c0_17, %c0_18] : memref<1x1x5xf32, #tpu.memory_space<vmem>>, vector<1x1x5xf32>
    %cst_19 = arith.constant dense<0.000000e+00> : vector<5xf32>
    %46 = vector.multi_reduction <add>, %36, %cst_19 [0] : vector<16x5xf32> to vector<5xf32>
    %47 = vector.shape_cast %46 : vector<5xf32> to vector<1x5xf32>
    %48 = vector.shape_cast %47 : vector<1x5xf32> to vector<1x1x5xf32>
    %49 = arith.addf %45, %48 : vector<1x1x5xf32>
    %c0_20 = arith.constant 0 : index
    %c0_21 = arith.constant 0 : index
    %c0_22 = arith.constant 0 : index
    %50 = vector.load %arg6[%c0_20, %c0_21, %c0_22] : memref<1x1x5xf32, #tpu.memory_space<vmem>>, vector<1x1x5xf32>
    tpu.vector_store %arg6[%c0_20, %c0_21, %c0_22], %49 {strides = array<i32>} : memref<1x1x5xf32, #tpu.memory_space<vmem>>, vector<1x1x5xf32>,
    %c0_23 = arith.constant 0 : index
    %c0_24 = arith.constant 0 : index
    %c0_25 = arith.constant 0 : index
    %51 = vector.load %arg7[%c0_23, %c0_24, %c0_25] : memref<1x1x5xf32, #tpu.memory_space<vmem>>, vector<1x1x5xf32>
    %52 = arith.mulf %38, %36 : vector<16x5xf32>
    %cst_26 = arith.constant dense<0.000000e+00> : vector<5xf32>
    %53 = vector.multi_reduction <add>, %52, %cst_26 [0] : vector<16x5xf32> to vector<5xf32>
    %54 = vector.shape_cast %53 : vector<5xf32> to vector<1x5xf32>
    %55 = vector.shape_cast %54 : vector<1x5xf32> to vector<1x1x5xf32>
    %56 = arith.addf %51, %55 : vector<1x1x5xf32>
    %c0_27 = arith.constant 0 : index
    %c0_28 = arith.constant 0 : index
    %c0_29 = arith.constant 0 : index
    %57 = vector.load %arg7[%c0_27, %c0_28, %c0_29] : memref<1x1x5xf32, #tpu.memory_space<vmem>>, vector<1x1x5xf32>
    tpu.vector_store %arg7[%c0_27, %c0_28, %c0_29], %56 {strides = array<i32>} : memref<1x1x5xf32, #tpu.memory_space<vmem>>, vector<1x1x5xf32>,
    return
  }
  func.func @transform_0(%arg0: i32, %arg1: i32) -> (i32, i32) {
    %c1_i32 = arith.constant 1 : i32
    %0 = arith.muli %arg0, %c1_i32 : i32
    %1 = arith.addi %0, %arg1 : i32
    %c1_i32_0 = arith.constant 1 : i32
    %2 = arith.minsi %1, %c1_i32_0 : i32
    %c0_i32 = arith.constant 0 : i32
    %c0_i32_1 = arith.constant 0 : i32
    return %2, %c0_i32 : i32, i32
  }
  func.func @transform_1(%arg0: i32, %arg1: i32) -> (i32, i32) {
    %c1_i32 = arith.constant 1 : i32
    %0 = arith.muli %arg0, %c1_i32 : i32
    %1 = arith.addi %0, %arg1 : i32
    %c1_i32_0 = arith.constant 1 : i32
    %2 = arith.minsi %1, %c1_i32_0 : i32
    %c0_i32 = arith.constant 0 : i32
    %c0_i32_1 = arith.constant 0 : i32
    return %2, %c0_i32 : i32, i32
  }
  func.func @transform_2(%arg0: i32, %arg1: i32) -> (i32, i32) {
    %c1_i32 = arith.constant 1 : i32
    %0 = arith.muli %arg0, %c1_i32 : i32
    %1 = arith.addi %0, %arg1 : i32
    %c1_i32_0 = arith.constant 1 : i32
    %2 = arith.minsi %1, %c1_i32_0 : i32
    %c0_i32 = arith.constant 0 : i32
    %c0_i32_1 = arith.constant 0 : i32
    return %2, %c0_i32 : i32, i32
  }
  func.func @transform_3(%arg0: i32, %arg1: i32) -> (i32, i32, i32) {
    %c0_i32 = arith.constant 0 : i32
    %c0_i32_0 = arith.constant 0 : i32
    %c0_i32_1 = arith.constant 0 : i32
    return %arg0, %c0_i32, %c0_i32_0 : i32, i32, i32
  }
  func.func @transform_4(%arg0: i32, %arg1: i32) -> (i32, i32, i32) {
    %c0_i32 = arith.constant 0 : i32
    %c0_i32_0 = arith.constant 0 : i32
    %c0_i32_1 = arith.constant 0 : i32
    return %arg0, %c0_i32, %c0_i32_0 : i32, i32, i32
  }
  func.func @transform_5(%arg0: i32, %arg1: i32) -> (i32, i32, i32) {
    %c0_i32 = arith.constant 0 : i32
    %c0_i32_0 = arith.constant 0 : i32
    %c0_i32_1 = arith.constant 0 : i32
    return %arg0, %c0_i32, %c0_i32_0 : i32, i32, i32
  }
}

</mosaic_0001>

<llo_original>
// kernel: tpu_custom_call.1
$region0: #{tpu_custom_call.1}
  #allocation0 [shape = 'u32[]', space=smem, size = 0x4, offset = 0x4, fixed_abs, tag = 'smem constant byte address 0x4 - core index']
  #allocation1 [shape = 'u32[144,128]{1,0:T(1,128)}', space=vmem, size = 0x12000, scoped, tag = 'internal scratch']
  %s0 = inlined_call_operand.vmem [shape: f32[32,5], index: 0, kind: input, shape index: {}]
  %s1 = inlined_call_operand.vmem [shape: s32[32,1], index: 1, kind: input, shape index: {}]
  %s2 = inlined_call_operand.vmem [shape: f32[32,1], index: 2, kind: input, shape index: {}]
  %s3 = inlined_call_operand.hbm [shape: f32[2,1,5], index: 3, kind: output, shape index: {0}]
  %s4 = inlined_call_operand.hbm [shape: f32[2,1,5], index: 4, kind: output, shape index: {1}]
  %s5 = inlined_call_operand.hbm [shape: f32[2,1,5], index: 5, kind: output, shape index: {2}]
  %6 = xla_tuple %s3, %s4, %s5
  %s7 = sld [smem:[#allocation0]]
  $region65: #{tpu_custom_call.1} parent=0
    _
  %s9 = ssub.s32 1, %s7
  %s10 = scalar_select 0, %s9, %s7
  $region1: #{tpu_custom_call.1} parent=0
    #allocation2 [shape = 'u8[1024]{0}', space=vmem, size = 0x400, scoped, tag = 'output window, operand 0']
    #allocation3 [shape = 's32[2]{0}', space=sflag, size = 0x8, scoped, tag = 'scoped memory for tpu_custom_call.1']
    #allocation4 [shape = 'u8[1024]{0}', space=vmem, size = 0x400, scoped, tag = 'output window, operand 1']
    #allocation5 [shape = 's32[2]{0}', space=sflag, size = 0x8, scoped, tag = 'scoped memory for tpu_custom_call.1']
    #allocation6 [shape = 'u8[1024]{0}', space=vmem, size = 0x400, scoped, tag = 'output window, operand 2']
    %11 = vsyncpa [#allocation3], 0
    %s12 = scalar_lea.sflag [#allocation3], 1
    %13 = vsyncpa %s12, 0
    %14 = vsyncpa [#allocation5], 0
    %s15 = scalar_lea.sflag [#allocation5], 1
    %16 = vsyncpa %s15, 0
    loop: start=0, step=1, limit=4
    $region2: #{tpu_custom_call.1} parent=1 // loop_pre_header
      _
    $region3: #{tpu_custom_call.1} parent=1 // loop_header
      %s18 = sphi 0, %s22
      %p19 = scmp.ge.s32.totalorder %s18, 4
      %s25 = sphi 0, %s37
      %s26 = sphi 0, %s33
      %s27 = sphi 0, %s25
      %s28 = sphi 0, %s26
      %s29 = sphi 0, %s27
      %s30 = sphi 0, %s28
      %s46 = sphi 0, %s48
      %s49 = sphi 0, %s46
      %s50 = sphi 0, %s49
      %s66 = sphi 0, %s50
      %s78 = sphi 0, %s80
      %s81 = sphi 0, %s78
      %s82 = sphi 0, %s81
      %s98 = sphi 0, %s82
      %s110 = sphi 0, %s112
      %s113 = sphi 0, %s110
      %s114 = sphi 0, %s113
      %s130 = sphi 0, %s114
      %s136 = sphi 0, %s138
      %s139 = sphi 0, %s136
      %s140 = sphi 0, %s139
      %s156 = sphi 0, %s140
      %s162 = sphi 0, %s164
      %s165 = sphi 0, %s162
      %s166 = sphi 0, %s165
      %s182 = sphi 0, %s166
      %s188 = sphi 0, %s190
      %s191 = sphi 0, %s188
      %s192 = sphi 0, %s191
      %s208 = sphi 0, %s192
    $region4: #{tpu_custom_call.1} parent=1 // loop_header_branch
      %21 = sbr.rel (%p19) target = $region8
    $region5: #{tpu_custom_call.1} parent=1 // loop_body
      %s23 = ssub.s32 %s18, 1
      %s24 = ssub.s32 %s18, 2
      %s31 = sadd.s32 1, %s26
      %p32 = scmp.ge.s32.totalorder %s31, 1
      %s33 = scalar_select %p32, 0, %s31
      %s34 = sadd.s32 1, %s25
      %s35 = scalar_select %p32, %s34, %s25
      %p36 = scmp.ge.s32.totalorder %s35, 2
      %s37 = scalar_select %p36, 0, %s35
      %s38 = sadd.s32 %s25, %s26
      %p39 = scmp.lt.s32.totalorder %s38, 1
      %s40 = scalar_select %p39, %s38, 1
      %s41 = sadd.s32 %s37, %s33
      %p42 = scmp.lt.s32.totalorder %s41, 1
      %s43 = scalar_select %p42, %s41, 1
      %s44 = ssub.s32 %s40, %s43
      %p45 = scmp.eq.s32.totalorder %s44, 0
      %s47 = sadd.s32 %s46, 1
      %s48 = scalar_select %p45, %s46, %s47
      %p51 = pneg %p45
      %p52 = scmp.eq.s32.totalorder %s18, 1
      %p53 = por %p51, %p52
      %p54 = scmp.ne.s32.totalorder %s46, %s49
      %p55 = scmp.eq.s32.totalorder %s18, 0
      %p56 = por %p54, %p55
      %p57 = scmp.ne.s32.totalorder %s46, %s49
      %p58 = scmp.eq.s32.totalorder %s23, 1
      %p59 = por %p57, %p58
      %p60 = scmp.ne.s32.totalorder %s49, %s50
      %p61 = scmp.eq.s32.totalorder %s23, 0
      %p62 = por %p60, %p61
      %p63 = scmp.ne.s32.totalorder %s49, %s50
      %p64 = scmp.eq.s32.totalorder %s24, 1
      %p65 = por %p63, %p64
      %p67 = scmp.ne.s32.totalorder %s50, %s66
      %p68 = scmp.eq.s32.totalorder %s24, 0
      %p69 = por %p67, %p68
      %s70 = sadd.s32 %s25, %s26
      %p71 = scmp.lt.s32.totalorder %s70, 1
      %s72 = scalar_select %p71, %s70, 1
      %s73 = sadd.s32 %s37, %s33
      %p74 = scmp.lt.s32.totalorder %s73, 1
      %s75 = scalar_select %p74, %s73, 1
      %s76 = ssub.s32 %s72, %s75
      %p77 = scmp.eq.s32.totalorder %s76, 0
      %s79 = sadd.s32 %s78, 1
      %s80 = scalar_select %p77, %s78, %s79
      %p83 = pneg %p77
      %p84 = scmp.eq.s32.totalorder %s18, 1
      %p85 = por %p83, %p84
      %p86 = scmp.ne.s32.totalorder %s78, %s81
      %p87 = scmp.eq.s32.totalorder %s18, 0
      %p88 = por %p86, %p87
      %p89 = scmp.ne.s32.totalorder %s78, %s81
      %p90 = scmp.eq.s32.totalorder %s23, 1
      %p91 = por %p89, %p90
      %p92 = scmp.ne.s32.totalorder %s81, %s82
      %p93 = scmp.eq.s32.totalorder %s23, 0
      %p94 = por %p92, %p93
      %p95 = scmp.ne.s32.totalorder %s81, %s82
      %p96 = scmp.eq.s32.totalorder %s24, 1
      %p97 = por %p95, %p96
      %p99 = scmp.ne.s32.totalorder %s82, %s98
      %p100 = scmp.eq.s32.totalorder %s24, 0
      %p101 = por %p99, %p100
      %s102 = sadd.s32 %s25, %s26
      %p103 = scmp.lt.s32.totalorder %s102, 1
      %s104 = scalar_select %p103, %s102, 1
      %s105 = sadd.s32 %s37, %s33
      %p106 = scmp.lt.s32.totalorder %s105, 1
      %s107 = scalar_select %p106, %s105, 1
      %s108 = ssub.s32 %s104, %s107
      %p109 = scmp.eq.s32.totalorder %s108, 0
      %s111 = sadd.s32 %s110, 1
      %s112 = scalar_select %p109, %s110, %s111
      %p115 = pneg %p109
      %p116 = scmp.eq.s32.totalorder %s18, 1
      %p117 = por %p115, %p116
      %p118 = scmp.ne.s32.totalorder %s110, %s113
      %p119 = scmp.eq.s32.totalorder %s18, 0
      %p120 = por %p118, %p119
      %p121 = scmp.ne.s32.totalorder %s110, %s113
      %p122 = scmp.eq.s32.totalorder %s23, 1
      %p123 = por %p121, %p122
      %p124 = scmp.ne.s32.totalorder %s113, %s114
      %p125 = scmp.eq.s32.totalorder %s23, 0
      %p126 = por %p124, %p125
      %p127 = scmp.ne.s32.totalorder %s113, %s114
      %p128 = scmp.eq.s32.totalorder %s24, 1
      %p129 = por %p127, %p128
      %p131 = scmp.ne.s32.totalorder %s114, %s130
      %p132 = scmp.eq.s32.totalorder %s24, 0
      %p133 = por %p131, %p132
      %s134 = ssub.s32 %s25, %s37
      %p135 = scmp.eq.s32.totalorder %s134, 0
      %s137 = sadd.s32 %s136, 1
      %s138 = scalar_select %p135, %s136, %s137
      %p141 = pneg %p135
      %p142 = scmp.eq.s32.totalorder %s18, 1
      %p143 = por %p141, %p142
      %p144 = scmp.ne.s32.totalorder %s136, %s139
      %p145 = scmp.eq.s32.totalorder %s18, 0
      %p146 = por %p144, %p145
      %p147 = scmp.ne.s32.totalorder %s136, %s139
      %p148 = scmp.eq.s32.totalorder %s23, 1
      %p149 = por %p147, %p148
      %p150 = scmp.ne.s32.totalorder %s139, %s140
      %p151 = scmp.eq.s32.totalorder %s23, 0
      %p152 = por %p150, %p151
      %p153 = scmp.ne.s32.totalorder %s139, %s140
      %p154 = scmp.eq.s32.totalorder %s24, 1
      %p155 = por %p153, %p154
      %p157 = scmp.ne.s32.totalorder %s140, %s156
      %p158 = scmp.eq.s32.totalorder %s24, 0
      %p159 = por %p157, %p158
      %s160 = ssub.s32 %s25, %s37
      %p161 = scmp.eq.s32.totalorder %s160, 0
      %s163 = sadd.s32 %s162, 1
      %s164 = scalar_select %p161, %s162, %s163
      %p167 = pneg %p161
      %p168 = scmp.eq.s32.totalorder %s18, 1
      %p169 = por %p167, %p168
      %p170 = scmp.ne.s32.totalorder %s162, %s165
      %p171 = scmp.eq.s32.totalorder %s18, 0
      %p172 = por %p170, %p171
      %p173 = scmp.ne.s32.totalorder %s162, %s165
      %p174 = scmp.eq.s32.totalorder %s23, 1
      %p175 = por %p173, %p174
      %p176 = scmp.ne.s32.totalorder %s165, %s166
      %p177 = scmp.eq.s32.totalorder %s23, 0
      %p178 = por %p176, %p177
      %p179 = scmp.ne.s32.totalorder %s165, %s166
      %p180 = scmp.eq.s32.totalorder %s24, 1
      %p181 = por %p179, %p180
      %p183 = scmp.ne.s32.totalorder %s166, %s182
      %p184 = scmp.eq.s32.totalorder %s24, 0
      %p185 = por %p183, %p184
      %s186 = ssub.s32 %s25, %s37
      %p187 = scmp.eq.s32.totalorder %s186, 0
      %s189 = sadd.s32 %s188, 1
      %s190 = scalar_select %p187, %s188, %s189
      %p193 = pneg %p187
      %p194 = scmp.eq.s32.totalorder %s18, 1
      %p195 = por %p193, %p194
      %p196 = scmp.ne.s32.totalorder %s188, %s191
      %p197 = scmp.eq.s32.totalorder %s18, 0
      %p198 = por %p196, %p197
      %p199 = scmp.ne.s32.totalorder %s188, %s191
      %p200 = scmp.eq.s32.totalorder %s23, 1
      %p201 = por %p199, %p200
      %p202 = scmp.ne.s32.totalorder %s191, %s192
      %p203 = scmp.eq.s32.totalorder %s23, 0
      %p204 = por %p202, %p203
      %p205 = scmp.ne.s32.totalorder %s191, %s192
      %p206 = scmp.eq.s32.totalorder %s24, 1
      %p207 = por %p205, %p206
      %p209 = scmp.ne.s32.totalorder %s192, %s208
      %p210 = scmp.eq.s32.totalorder %s24, 0
      %p211 = por %p209, %p210
      %p212 = scmp.le.s32.totalorder 1, %s18
      %p213 = scmp.lt.s32.totalorder %s18, 3
      %p214 = pnand %p212, %p213
      %p215 = pneg %p214
      // Predicated region
      $region9: #{tpu_custom_call.1} parent=5 // pred_check
        _
      $region10: #{tpu_custom_call.1} parent=5 // pred_check_branch
        %217 = sbr.rel (%p214) target = $region12
      $region11: #{tpu_custom_call.1} parent=5 // pred_region
        %s218 = ssub.s32 %s18, 1
      $region12: #{tpu_custom_call.1} parent=5 // pred_fallthru
        _
      %p219 = scmp.lt.s32.totalorder %s18, 2
      // Predicated region
      $region13: #{tpu_custom_call.1} parent=5 // pred_check
        %p220 = pneg %p219
      $region14: #{tpu_custom_call.1} parent=5 // pred_check_branch
        %222 = sbr.rel (%p220) target = $region16
      $region15: #{tpu_custom_call.1} parent=5 // pred_region
        // Predicated region
        $region17: #{tpu_custom_call.1} parent=15 // pred_check
          %p223 = pneg %p56
        $region18: #{tpu_custom_call.1} parent=15 // pred_check_branch
          %225 = sbr.rel (%p223) target = $region20
        $region19: #{tpu_custom_call.1} parent=15 // pred_region
          %s226 = sadd.s32 %s25, %s26
          %p227 = scmp.lt.s32.totalorder %s226, 1
          %s228 = scalar_select %p227, %s226, 1
          %s229 = smul.u32 2, %s228
          %p230 = scmp.lt.s32.totalorder %s229, 3
          %s231 = scalar_select %p230, %s229, 3
          %s232 = smul.addr %s231, 8
          %s233 = scalar_lea.vmem %s0, %s232
          %s234 = sadd.s32 %s25, %s26
          %p235 = scmp.lt.s32.totalorder %s234, 1
          %s236 = scalar_select %p235, %s234, 1
          %s237 = smul.u32 2, %s236
        $region20: #{tpu_custom_call.1} parent=15 // pred_fallthru
          _
        // Predicated region
        $region21: #{tpu_custom_call.1} parent=15 // pred_check
          %p238 = pneg %p88
        $region22: #{tpu_custom_call.1} parent=15 // pred_check_branch
          %240 = sbr.rel (%p238) target = $region24
        $region23: #{tpu_custom_call.1} parent=15 // pred_region
          %s241 = sadd.s32 %s25, %s26
          %p242 = scmp.lt.s32.totalorder %s241, 1
          %s243 = scalar_select %p242, %s241, 1
          %s244 = smul.u32 2, %s243
          %p245 = scmp.lt.s32.totalorder %s244, 3
          %s246 = scalar_select %p245, %s244, 3
          %s247 = smul.addr %s246, 8
          %s248 = scalar_lea.vmem %s1, %s247
          %s249 = sadd.s32 %s25, %s26
          %p250 = scmp.lt.s32.totalorder %s249, 1
          %s251 = scalar_select %p250, %s249, 1
          %s252 = smul.u32 2, %s251
        $region24: #{tpu_custom_call.1} parent=15 // pred_fallthru
          _
        // Predicated region
        $region25: #{tpu_custom_call.1} parent=15 // pred_check
          %p253 = pneg %p120
        $region26: #{tpu_custom_call.1} parent=15 // pred_check_branch
          %255 = sbr.rel (%p253) target = $region28
        $region27: #{tpu_custom_call.1} parent=15 // pred_region
          %s256 = sadd.s32 %s25, %s26
          %p257 = scmp.lt.s32.totalorder %s256, 1
          %s258 = scalar_select %p257, %s256, 1
          %s259 = smul.u32 2, %s258
          %p260 = scmp.lt.s32.totalorder %s259, 3
          %s261 = scalar_select %p260, %s259, 3
          %s262 = smul.addr %s261, 8
          %s263 = scalar_lea.vmem %s2, %s262
          %s264 = sadd.s32 %s25, %s26
          %p265 = scmp.lt.s32.totalorder %s264, 1
          %s266 = scalar_select %p265, %s264, 1
          %s267 = smul.u32 2, %s266
        $region28: #{tpu_custom_call.1} parent=15 // pred_fallthru
          _
      $region16: #{tpu_custom_call.1} parent=5 // pred_fallthru
        _
      %p268 = scmp.le.s32.totalorder 1, %s18
      %p269 = scmp.lt.s32.totalorder %s18, 3
      %p270 = pnand %p268, %p269
      %p271 = pneg %p270
      // Predicated region
      $region29: #{tpu_custom_call.1} parent=5 // pred_check
        _
      $region30: #{tpu_custom_call.1} parent=5 // pred_check_branch
        %273 = sbr.rel (%p270) target = $region32
      $region31: #{tpu_custom_call.1} parent=5 // pred_region
        %s274 = ssub.s32 %s18, 1
        %s275 = sadd.s32 %s27, %s28
        %p276 = scmp.lt.s32.totalorder %s275, 1
        %s277 = scalar_select %p276, %s275, 1
        %s278 = smul.u32 2, %s277
        %p279 = scmp.lt.s32.totalorder %s278, 3
        %s280 = scalar_select %p279, %s278, 3
        %s281 = smul.addr %s280, 8
        %s282 = scalar_lea.vmem %s0, %s281
        %p283 = pneg %p62
        %p284 = pneg %p59
        %s285 = sadd.s32 %s27, %s28
        %p286 = scmp.lt.s32.totalorder %s285, 1
        %s287 = scalar_select %p286, %s285, 1
        %s288 = smul.u32 2, %s287
        %p289 = scmp.lt.s32.totalorder %s288, 3
        %s290 = scalar_select %p289, %s288, 3
        %s291 = smul.addr %s290, 8
        %s292 = scalar_lea.vmem %s1, %s291
        %p293 = pneg %p94
        %p294 = pneg %p91
        %s295 = sadd.s32 %s27, %s28
        %p296 = scmp.lt.s32.totalorder %s295, 1
        %s297 = scalar_select %p296, %s295, 1
        %s298 = smul.u32 2, %s297
        %p299 = scmp.lt.s32.totalorder %s298, 3
        %s300 = scalar_select %p299, %s298, 3
        %s301 = smul.addr %s300, 8
        %s302 = scalar_lea.vmem %s2, %s301
        %p303 = pneg %p126
        %p304 = pneg %p123
        %p305 = pneg %p152
        %p306 = pneg %p149
        %s307 = sand.u32 %s139, 1
        %s308 = scalar_lea.sflag [#allocation3], %s307
        %s309 = sand.u32 %s139, 1
        %s310 = scalar_lea.vmem [#allocation2], %s309
        %p311 = pneg %p178
        %p312 = pneg %p175
        %s313 = sand.u32 %s23, 1
        %s314 = scalar_lea.sflag [#allocation5], %s313
        %s315 = sand.u32 %s165, 1
        %s316 = scalar_lea.vmem [#allocation4], %s315
        %p317 = pneg %p204
        %p318 = pneg %p201
        %s319 = sand.u32 %s23, 1
        %s320 = scalar_lea.sflag [#allocation5], %s319
        %s321 = sand.u32 %s191, 1
        %s322 = scalar_lea.vmem [#allocation6], %s321
        %s323 = sadd.s32 %s27, %s28
        %p324 = scmp.lt.s32.totalorder %s323, 1
        %s325 = scalar_select %p324, %s323, 1
        %s326 = smul.u32 2, %s325
        %p327 = scmp.lt.s32.totalorder %s326, 3
        %s328 = scalar_select %p327, %s326, 3
        %s329 = smul.addr %s328, 8
        %s330 = scalar_lea.vmem %s0, %s329
        %s331 = sadd.s32 %s27, %s28
        %p332 = scmp.lt.s32.totalorder %s331, 1
        %s333 = scalar_select %p332, %s331, 1
        %s334 = smul.u32 2, %s333
        %s335 = sadd.s32 %s27, %s28
        %p336 = scmp.lt.s32.totalorder %s335, 1
        %s337 = scalar_select %p336, %s335, 1
        %s338 = smul.u32 2, %s337
        %p339 = scmp.lt.s32.totalorder %s338, 3
        %s340 = scalar_select %p339, %s338, 3
        %s341 = smul.addr %s340, 8
        %s342 = scalar_lea.vmem %s1, %s341
        %s343 = sadd.s32 %s27, %s28
        %p344 = scmp.lt.s32.totalorder %s343, 1
        %s345 = scalar_select %p344, %s343, 1
        %s346 = smul.u32 2, %s345
        %s347 = sadd.s32 %s27, %s28
        %p348 = scmp.lt.s32.totalorder %s347, 1
        %s349 = scalar_select %p348, %s347, 1
        %s350 = smul.u32 2, %s349
        %p351 = scmp.lt.s32.totalorder %s350, 3
        %s352 = scalar_select %p351, %s350, 3
        %s353 = smul.addr %s352, 8
        %s354 = scalar_lea.vmem %s2, %s353
        %s355 = sadd.s32 %s27, %s28
        %p356 = scmp.lt.s32.totalorder %s355, 1
        %s357 = scalar_select %p356, %s355, 1
        %s358 = smul.u32 2, %s357
        %p359 = scmp.eq.s32.totalorder %s28, 0
        // Predicated region
        $region33: #{tpu_custom_call.1} parent=31 // pred_check
          %p360 = pneg %p359
        $region34: #{tpu_custom_call.1} parent=31 // pred_check_branch
          %362 = sbr.rel (%p360) target = $region36
        $region35: #{tpu_custom_call.1} parent=31 // pred_region
          %vm363 = vcmask 32768
          %364 = vst.msk [vmem:[%s310] sm:$0x1] %vm363, 0.0
          %365 = vst.msk [vmem:[%s316] sm:$0x1] %vm363, 0.0
          %366 = vst.msk [vmem:[%s322] sm:$0x1] %vm363, 0.0
        $region36: #{tpu_custom_call.1} parent=31 // pred_fallthru
          _
        %s367 = sadd.s32 %s27, %s28
        %s368 = smul.u32 %s367, 16
        %v369 = vlaneseq
        %v370 = vshrl.u32 %v369, 7
        %v371 = vadd.s32 %v370, 8
        %v372 = vstv %s368
        %v373 = vadd.s32 %v372, %v370
        %v374 = vadd.s32 %v372, %v371
        %vm375 = vcmp.lt.s32.totalorder %v373, 32
        %vm376 = vcmp.lt.s32.totalorder %v374, 32
        %v377 = vld [vmem:[%s330] sm:$0xff]
        %v378 = vld [vmem:[%s330 + $0x8] sm:$0xff]
        %v379 = vsel %vm375, 1, 0
        %v380 = vsel %vm376, 1, 0
        %vm381 = vcmp.eq.s32.totalorder %v379, 1
        %vm382 = vcmp.eq.s32.totalorder %v380, 1
        %v383 = vsel %vm381, %v377, 0.0
        %v384 = vsel %vm382, %v378, 0.0
        %vm385 = vcmask 39936
        %v386 = vsel %vm385, %v383, -inf
        %387 = vmax.xlane.f32.xlu0 %v386
        %v388 = vpop.xlane.xlu0 %387
        %v389 = vsel %vm385, %v384, -inf
        %390 = vmax.xlane.f32.xlu0 %v389
        %v391 = vpop.xlane.xlu0 %390
        %v392 = vsub.f32 %v383, %v388
        %v393 = vsub.f32 %v384, %v391
        %v394 = vmul.f32 %v392, 1.442695
        %v395 = vpow.pop %v394
        %v396 = vmul.f32 %v393, 1.442695
        %v397 = vpow.pop %v396
        %v398 = vsel %vm385, %v395, 0.0
        %399 = vadd.xlane.f32.xlu0 %v398
        %v400 = vpop.xlane.xlu0 %399
        %v401 = vsel %vm385, %v397, 0.0
        %402 = vadd.xlane.f32.xlu0 %v401
        %v403 = vpop.xlane.xlu0 %402
        %v404 = vrcp.pop %v400
        %v405 = vrcp.pop %v403
        %v406 = vmul.f32 %v395, %v404
        %v407 = vmul.f32 %v397, %v405
        %v408 = vld [vmem:[%s354] sm:$0xff]
        %v409 = vld [vmem:[%s354 + $0x8] sm:$0xff]
        %v410 = vsel %vm375, %v408, 0.0
        %v411 = vsel %vm376, %v409, 0.0
        %v412 = vld [vmem:[%s342] sm:$0xff]
        %v413 = vld [vmem:[%s342 + $0x8] sm:$0xff]
        %v414 = vlaneseq
        %v415 = vand.u32 %v414, 127
        %416 = vset.pattern.permute.xlu0 0
        %417 = vperm.xlu0 %416, %v412
        %v418 = vpop.permute.xlu0 %417
        %419 = vset.pattern.permute.xlu0 0
        %420 = vperm.xlu0 %419, %v413
        %v421 = vpop.permute.xlu0 %420
        %vm422 = vcmp.eq.s32.totalorder %v415, %v418
        %vm423 = vcmp.eq.s32.totalorder %v415, %v421
        %v424 = vsel %vm422, 1, 0
        %v425 = vsel %vm423, 1, 0
        %v426 = vcvt.s32.f32 %v424
        %v427 = vcvt.s32.f32 %v425
        %429 = vset.pattern.permute.xlu0 0
        %430 = vperm.xlu0 %429, %v410
        %v431 = vpop.permute.xlu0 %430
        %434 = vset.pattern.permute.xlu0 0
        %435 = vperm.xlu0 %434, %v411
        %v436 = vpop.permute.xlu0 %435
        %v438 = vmul.f32 %v426, %v431
        %v439 = vmul.f32 %v427, %v436
        %v440 = vmul.f32 %v406, %v431
        %v441 = vmul.f32 %v407, %v436
        %v442 = vld [vmem:[%s310] sm:$0x1]
        %v443 = vsel %vm385, %v440, 0.0
        %v444 = vsel %vm385, %v441, 0.0
        %v445 = vadd.f32 %v443, %v444
        %v446 = vrot.slane %v445, 4
        %v447 = vadd.f32 %v445, %v446
        %v448 = vrot.slane %v447, 2
        %v449 = vadd.f32 %v447, %v448
        %v450 = vrot.slane %v449, 1
        %v451 = vadd.f32 %v449, %v450
        %v452 = vadd.f32 %v442, %v451
        %vm453 = vcmask 32768
        %454 = vst.msk [vmem:[%s310] sm:$0x1] %vm453, %v452
        %v455 = vld [vmem:[%s316] sm:$0x1]
        %v456 = vsel %vm385, %v438, 0.0
        %v457 = vsel %vm385, %v439, 0.0
        %v458 = vadd.f32 %v456, %v457
        %v459 = vrot.slane %v458, 4
        %v460 = vadd.f32 %v458, %v459
        %v461 = vrot.slane %v460, 2
        %v462 = vadd.f32 %v460, %v461
        %v463 = vrot.slane %v462, 1
        %v464 = vadd.f32 %v462, %v463
        %v465 = vadd.f32 %v455, %v464
        %466 = vst.msk [vmem:[%s316] sm:$0x1] %vm453, %v465
        %v467 = vld [vmem:[%s322] sm:$0x1]
        %v468 = vmul.f32 %v440, %v438
        %v469 = vmul.f32 %v441, %v439
        %v470 = vsel %vm385, %v468, 0.0
        %v471 = vsel %vm385, %v469, 0.0
        %v472 = vadd.f32 %v470, %v471
        %v473 = vrot.slane %v472, 4
        %v474 = vadd.f32 %v472, %v473
        %v475 = vrot.slane %v474, 2
        %v476 = vadd.f32 %v474, %v475
        %v477 = vrot.slane %v476, 1
        %v478 = vadd.f32 %v476, %v477
        %v479 = vadd.f32 %v467, %v478
        %480 = vst.msk [vmem:[%s322] sm:$0x1] %vm453, %v479
        %s481 = sand.u32 %s139, 1
        %s482 = scalar_lea.sflag [#allocation3], %s481
        %s483 = sand.u32 %s139, 1
        %s484 = scalar_lea.vmem [#allocation2], %s483
        %s485 = sand.u32 %s23, 1
        %s486 = scalar_lea.sflag [#allocation5], %s485
        %s487 = sand.u32 %s165, 1
        %s488 = scalar_lea.vmem [#allocation4], %s487
        %s489 = sand.u32 %s23, 1
        %s490 = scalar_lea.sflag [#allocation5], %s489
        %s491 = sand.u32 %s191, 1
        %s492 = scalar_lea.vmem [#allocation6], %s491
        // Predicated region
        $region37: #{tpu_custom_call.1} parent=31 // pred_check
          %p493 = pneg %p149
        $region38: #{tpu_custom_call.1} parent=31 // pred_check_branch
          %495 = sbr.rel (%p493) target = $region40
        $region39: #{tpu_custom_call.1} parent=31 // pred_region
          %s497 = ssub.s32 16, 16
          %498 = vsyncadd %s482, %s497
          %s499 = smul.addr %s27, 16
          %s500 = scalar_lea.hbm %s3, %s499
          %s502 = sshll.u32 %s484, 4
          %s503 = int_to_ptr.vmem [resolvable:$true] %s502
          %505 = dma.vmem_to_hbm [thread:$0]  %s503, 16, %s500, %s482
        $region40: #{tpu_custom_call.1} parent=31 // pred_fallthru
          _
        // Predicated region
        $region41: #{tpu_custom_call.1} parent=31 // pred_check
          %p506 = pneg %p175
        $region42: #{tpu_custom_call.1} parent=31 // pred_check_branch
          %508 = sbr.rel (%p506) target = $region44
        $region43: #{tpu_custom_call.1} parent=31 // pred_region
          %s510 = ssub.s32 16, 16
          %511 = vsyncadd %s486, %s510
          %s512 = smul.addr %s27, 16
          %s513 = scalar_lea.hbm %s4, %s512
          %s515 = sshll.u32 %s488, 4
          %s516 = int_to_ptr.vmem [resolvable:$true] %s515
          %518 = dma.vmem_to_hbm [thread:$0]  %s516, 16, %s513, %s486
        $region44: #{tpu_custom_call.1} parent=31 // pred_fallthru
          _
        // Predicated region
        $region45: #{tpu_custom_call.1} parent=31 // pred_check
          %p519 = pneg %p201
        $region46: #{tpu_custom_call.1} parent=31 // pred_check_branch
          %521 = sbr.rel (%p519) target = $region48
        $region47: #{tpu_custom_call.1} parent=31 // pred_region
          %s523 = ssub.s32 16, 16
          %524 = vsyncadd %s490, %s523
          %s525 = smul.addr %s27, 16
          %s526 = scalar_lea.hbm %s5, %s525
          %s528 = sshll.u32 %s492, 4
          %s529 = int_to_ptr.vmem [resolvable:$true] %s528
          %531 = dma.vmem_to_hbm [thread:$0]  %s529, 16, %s526, %s490
        $region48: #{tpu_custom_call.1} parent=31 // pred_fallthru
          _
      $region32: #{tpu_custom_call.1} parent=5 // pred_fallthru
        _
      %p532 = scmp.le.s32.totalorder 2, %s18
      // Predicated region
      $region49: #{tpu_custom_call.1} parent=5 // pred_check
        %p533 = pneg %p532
      $region50: #{tpu_custom_call.1} parent=5 // pred_check_branch
        %535 = sbr.rel (%p533) target = $region52
      $region51: #{tpu_custom_call.1} parent=5 // pred_region
        %s536 = ssub.s32 %s18, 2
        // Predicated region
        $region53: #{tpu_custom_call.1} parent=51 // pred_check
          %p537 = pneg %p155
        $region54: #{tpu_custom_call.1} parent=51 // pred_check_branch
          %539 = sbr.rel (%p537) target = $region56
        $region55: #{tpu_custom_call.1} parent=51 // pred_region
          %s540 = sand.u32 %s140, 1
          %s541 = scalar_lea.sflag [#allocation3], %s540
          %s542 = sand.u32 %s140, 1
          %s543 = scalar_lea.vmem [#allocation2], %s542
          %544 = dma.done %s541, 16
        $region56: #{tpu_custom_call.1} parent=51 // pred_fallthru
          _
        // Predicated region
        $region57: #{tpu_custom_call.1} parent=51 // pred_check
          %p545 = pneg %p181
        $region58: #{tpu_custom_call.1} parent=51 // pred_check_branch
          %547 = sbr.rel (%p545) target = $region60
        $region59: #{tpu_custom_call.1} parent=51 // pred_region
          %s548 = sand.u32 %s24, 1
          %s549 = scalar_lea.sflag [#allocation5], %s548
          %s550 = sand.u32 %s166, 1
          %s551 = scalar_lea.vmem [#allocation4], %s550
          %552 = dma.done %s549, 16
        $region60: #{tpu_custom_call.1} parent=51 // pred_fallthru
          _
        // Predicated region
        $region61: #{tpu_custom_call.1} parent=51 // pred_check
          %p553 = pneg %p207
        $region62: #{tpu_custom_call.1} parent=51 // pred_check_branch
          %555 = sbr.rel (%p553) target = $region64
        $region63: #{tpu_custom_call.1} parent=51 // pred_region
          %s556 = sand.u32 %s24, 1
          %s557 = scalar_lea.sflag [#allocation5], %s556
          %s558 = sand.u32 %s192, 1
          %s559 = scalar_lea.vmem [#allocation6], %s558
          %560 = dma.done %s557, 16
        $region64: #{tpu_custom_call.1} parent=51 // pred_fallthru
          _
      $region52: #{tpu_custom_call.1} parent=5 // pred_fallthru
        _
    $region6: #{tpu_custom_call.1} parent=1 // loop_footer
      %s22 = sadd.s32 1, %s18
    $region7: #{tpu_custom_call.1} parent=1 // loop_footer_branch
      %17 = sbr.rel target = $region3
    $region8: #{tpu_custom_call.1} parent=1 // loop_exit
      _
    %561 = vsyncpa [#allocation3], 1
    %s562 = scalar_lea.sflag [#allocation3], 1
    %563 = vsyncpa %s562, 1
    %564 = vsyncpa [#allocation5], 1
    %s565 = scalar_lea.sflag [#allocation5], 1
    %566 = vsyncpa %s565, 1

</llo_original>
